<compile_context>
chip_gen: v5e
topology: v5e:2x2
jax: 0.10.0
libtpu: 0.0.40
codegen_flags: <defaults>
</compile_context>

<pallas_src>
import jax
import jax.numpy as jnp
from jax.experimental import pallas as pl
from jax.experimental.pallas import tpu as pltpu


def _exp_kernel(x_ref, o_ref):
    o_ref[...] = jnp.exp(x_ref[...])


# Minimum second-to-last block dim per element size (packed-tile constraint).
_SUBLANE_MIN = {1: 32, 2: 16, 4: 8, 8: 8}

# Prefer wide, lane-dense slabs.
_WIDTH_CANDIDATES = (4096, 2048, 1024, 512, 256, 128)

# Above this total size, force >= 2 grid blocks so both v7x cores stream.
_MIN_SPLIT_BYTES = 512 * 1024

# Conservative fallback when the chip can't be queried (v5e-safe: 8 MiB
# resident under the 16 MiB scoped-VMEM default).
_FALLBACK_BLOCK_BYTES = 2 * 1024 * 1024


def _round_up(x, m):
    return ((x + m - 1) // m) * m


def _chip_block_budget():
    """Returns (block_bytes, vmem_limit_bytes or None) for the local chip."""
    try:
        info = pltpu.get_tpu_info()
        vmem = int(getattr(info, "vmem_capacity_bytes", 0) or 0)
    except Exception:
        vmem = 0
    if vmem <= 0:
        return _FALLBACK_BLOCK_BYTES, None
    # 4x resident (input + output, each double-buffered). Target ~4 MiB blocks
    # (16 MiB footprint) and request a scoped limit with headroom, capped at
    # half of physical VMEM (32 MiB on v7x's 64 MiB, 32 MiB on v5e/v6e).
    limit = min(vmem // 2, 32 * 1024 * 1024)
    block = 4 * 1024 * 1024
    if 4 * block > limit:
        block = max(256 * 1024, ((limit // 4) // (64 * 1024)) * (64 * 1024))
    return block, limit


def _exp_pallas_2d(x2d, *, donate=False, target_block_bytes=None):
    rows, cols = x2d.shape
    itemsize = jnp.dtype(x2d.dtype).itemsize
    sub_min = _SUBLANE_MIN.get(itemsize, 8)

    block_bytes, vmem_limit = _chip_block_budget()
    if target_block_bytes is not None:
        block_bytes = target_block_bytes

    bytes_per_row = cols * itemsize
    total_bytes = rows * bytes_per_row

    tile_rows = max(sub_min, (block_bytes // bytes_per_row) // sub_min * sub_min)

    if tile_rows >= rows:
        if total_bytes > _MIN_SPLIT_BYTES and rows >= 2 * sub_min:
            # Keep >= 2 blocks so the "parallel" axis can shard across both
            # TensorCores on v7x even when one block would have fit.
            tile_rows = _round_up(pl.cdiv(rows, 2), sub_min)
        else:
            tile_rows = rows
    else:
        # Prefer an even block count so both v7x cores get balanced work.
        nblocks = pl.cdiv(rows, tile_rows)
        if nblocks > 1 and nblocks % 2 == 1:
            tile_rows = max(sub_min,
                            _round_up(pl.cdiv(rows, nblocks + 1), sub_min))

    grid = (pl.cdiv(rows, tile_rows),)

    n = rows * cols
    cost = pl.CostEstimate(flops=0, transcendentals=n,
                           bytes_accessed=2 * n * itemsize)

    cp_kwargs = dict(dimension_semantics=("parallel",))
    if vmem_limit is not None:
        cp_kwargs["vmem_limit_bytes"] = vmem_limit

    extra = {}
    if donate:
        extra["input_output_aliases"] = {0: 0}

    return pl.pallas_call(
        _exp_kernel,
        out_shape=jax.ShapeDtypeStruct((rows, cols), x2d.dtype),
        grid_spec=pltpu.PrefetchScalarGridSpec(
            num_scalar_prefetch=0,
            grid=grid,
            in_specs=[pl.BlockSpec((tile_rows, cols), lambda i: (i, 0))],
            out_specs=pl.BlockSpec((tile_rows, cols), lambda i: (i, 0)),
        ),
        compiler_params=pltpu.CompilerParams(**cp_kwargs),
        cost_estimate=cost,
        **extra,
    )(x2d)


def sigmoid_to_log_depth_single(x, *, donate=False, target_block_bytes=None):
    """exp(x) for a single array of arbitrary shape (e.g. NCHW)."""
    n = x.size
    if n == 0:
        return jnp.exp(x)

    width = None
    for w in _WIDTH_CANDIDATES:
        if n % w == 0:
            width = w
            break
    if width is None:
        # Element count not a multiple of 128: padding + slicing would add a
        # full extra HBM round trip to a bandwidth-bound op, so let XLA's
        # (fusable) elementwise exp handle this rare case instead.
        return jnp.exp(x)

    x2d = x.reshape(n // width, width)  # contiguous reshape: no HBM copy
    y2d = _exp_pallas_2d(x2d, donate=donate,
                         target_block_bytes=target_block_bytes)
    return y2d.reshape(x.shape)


def sigmoid_to_log_depth(sigmoid, *, donate=False):
    """Mirrors @iterate2: applies exp over lists/tuples of tensors too."""
    if isinstance(sigmoid, (list, tuple)):
        return type(sigmoid)(sigmoid_to_log_depth(s, donate=donate)
                             for s in sigmoid)
    return sigmoid_to_log_depth_single(sigmoid, donate=donate)


if __name__ == "__main__":
    key = jax.random.PRNGKey(0)

    # NCHW input, values in (0,1) like a sigmoid output
    x = jax.nn.sigmoid(jax.random.normal(key, (2, 4, 16, 16), dtype=jnp.float32))
    out = jax.block_until_ready(sigmoid_to_log_depth(x))
    ref = jnp.exp(x)
    assert out.shape == x.shape and out.dtype == x.dtype
    assert jnp.allclose(out, ref, atol=1e-6, rtol=1e-6)

    # list path from @iterate2, plus a shape whose element count picks a
    # different slab width (3*8*40*40 = 38400 -> width 512).
    x2 = jax.nn.sigmoid(
        jax.random.normal(jax.random.PRNGKey(0), (3, 8, 40, 40),
                          dtype=jnp.float32))
    outs = sigmoid_to_log_depth([x, x2])
    jax.block_until_ready(outs[1])
    assert jnp.allclose(outs[0], ref, atol=1e-6, rtol=1e-6)
    assert jnp.allclose(outs[1], jnp.exp(x2), atol=1e-6, rtol=1e-6)

    # Exercise the cdiv grid with a masked partial last block by shrinking the
    # block budget: (1, 3, 40, 32) -> n=3840 -> width 256, rows 15,
    # tile_rows 8, grid=(2,) with a 7-row overhang in the final block.
    x3 = jax.nn.sigmoid(
        jax.random.normal(jax.random.PRNGKey(0), (1, 3, 40, 32),
                          dtype=jnp.float32))
    out3 = jax.block_until_ready(
        sigmoid_to_log_depth_single(x3, target_block_bytes=8192))
    assert jnp.allclose(out3, jnp.exp(x3), atol=1e-6, rtol=1e-6)

    # Larger tensor (~1.1 MiB) exercising the >=2-block split path so the
    # parallel axis can shard across both v7x TensorCores.
    x4 = jax.nn.sigmoid(
        jax.random.normal(jax.random.PRNGKey(0), (2, 3, 192, 256),
                          dtype=jnp.float32))
    out4 = jax.block_until_ready(sigmoid_to_log_depth_single(x4))
    assert jnp.allclose(out4, jnp.exp(x4), atol=1e-6, rtol=1e-6)

    print("KERNEL_OK")
</pallas_src>

<mosaic_0001>
module attributes {stable_mosaic.version = 11 : i64} {
  func.func @_exp_kernel(%arg0: i32, %arg1: memref<1x2048xf32, #tpu.memory_space<vmem>>, %arg2: memref<1x2048xf32, #tpu.memory_space<vmem>>) attributes {dimension_semantics = [#tpu.dimension_semantics<parallel>], iteration_bounds = array<i64: 1>, scalar_prefetch = 0 : i64, scratch_operands = 0 : i64, tpu.core_type = #tpu.core_type<tc>, window_params = [{transform_indices = @transform_0, window_bounds = array<i64: 1, 2048>}, {transform_indices = @transform_1, window_bounds = array<i64: 1, 2048>}]} {
    %c0 = arith.constant 0 : index
    %c0_0 = arith.constant 0 : index
    %0 = vector.load %arg1[%c0, %c0_0] : memref<1x2048xf32, #tpu.memory_space<vmem>>, vector<1x2048xf32>
    %1 = math.exp %0 : vector<1x2048xf32>
    %c0_1 = arith.constant 0 : index
    %c0_2 = arith.constant 0 : index
    %2 = vector.load %arg2[%c0_1, %c0_2] : memref<1x2048xf32, #tpu.memory_space<vmem>>, vector<1x2048xf32>
    tpu.vector_store %arg2[%c0_1, %c0_2], %1 {strides = array<i32>} : memref<1x2048xf32, #tpu.memory_space<vmem>>, vector<1x2048xf32>,
    return
  }
  func.func @transform_0(%arg0: i32) -> (i32, i32) {
    %c0_i32 = arith.constant 0 : i32
    %c0_i32_0 = arith.constant 0 : i32
    return %arg0, %c0_i32 : i32, i32
  }
  func.func @transform_1(%arg0: i32) -> (i32, i32) {
    %c0_i32 = arith.constant 0 : i32
    %c0_i32_0 = arith.constant 0 : i32
    return %arg0, %c0_i32 : i32, i32
  }
}

</mosaic_0001>

<llo_original>
// kernel: tpu_custom_call.1
$region0: #{tpu_custom_call.1}
  #allocation0 [shape = 'u32[]', space=smem, size = 0x4, offset = 0x4, fixed_abs, tag = 'smem constant byte address 0x4 - core index']
  #allocation1 [shape = 'u32[72,128]{1,0:T(1,128)}', space=vmem, size = 0x9000, scoped, tag = 'internal scratch']
  %s0 = inlined_call_operand.hbm [shape: f32[1,2048], index: 0, kind: input, shape index: {}]
  %s1 = inlined_call_operand.hbm [shape: f32[1,2048], index: 1, kind: output, shape index: {}]
  %s2 = sld [smem:[#allocation0]]
  $region18: #{tpu_custom_call.1} parent=0
    _
  %s4 = ssub.s32 1, %s2
  %s5 = scalar_select 0, %s4, %s2
  $region1: #{tpu_custom_call.1} parent=0
    #allocation2 [shape = 'u8[8192]{0}', space=vmem, size = 0x2000, scoped, tag = 'input window, operand 0, single buffered']
    #allocation3 [shape = 's32[1]{0}', space=sflag, size = 0x4, scoped, tag = 'scoped memory for tpu_custom_call.1']
    #allocation4 [shape = 's32[1]{0}', space=sflag, size = 0x4, scoped, tag = 'scoped memory for tpu_custom_call.1']
    #allocation5 [shape = 'u8[8192]{0}', space=vmem, size = 0x2000, scoped, tag = 'output window, operand 0, single buffered']
    %6 = vsyncpa [#allocation3], 0
    %7 = vsyncpa [#allocation4], 0
    // Predicated region
    $region2: #{tpu_custom_call.1} parent=1 // pred_check
      _
    $region3: #{tpu_custom_call.1} parent=1 // pred_check_branch
      %9 = sbr.rel (0) target = $region5
    $region4: #{tpu_custom_call.1} parent=1 // pred_region
      %11 = vsyncadd [#allocation3], 0
      %s13 = sshll.u32 %s0, 4
      %s14 = int_to_ptr.hbm [resolvable:$true] %s13
      %s15 = sshll.u32 [#allocation2], 4
      %s16 = int_to_ptr.vmem [resolvable:$true] %s15
      %18 = dma.hbm_to_vmem [thread:$0]  %s14, 256, %s16, [#allocation3]
    $region5: #{tpu_custom_call.1} parent=1 // pred_fallthru
      _
    // Predicated region
    $region6: #{tpu_custom_call.1} parent=1 // pred_check
      _
    $region7: #{tpu_custom_call.1} parent=1 // pred_check_branch
      %20 = sbr.rel (0) target = $region9
    $region8: #{tpu_custom_call.1} parent=1 // pred_region
      %22 = dma.done [#allocation3], 256
    $region9: #{tpu_custom_call.1} parent=1 // pred_fallthru
      _
    %v23 = vld [vmem:[#allocation2] sm:$0xff]
    %v24 = vld [vmem:[#allocation2 + $0x8] sm:$0xff]
    %v25 = vmul.f32 %v23, 1.442695
    %v26 = vpow.pop %v25
    %v27 = vmul.f32 %v24, 1.442695
    %v28 = vpow.pop %v27
    %29 = vst [vmem:[#allocation5] sm:$0xff] %v26
    %30 = vst [vmem:[#allocation5 + $0x8] sm:$0xff] %v28
    // Predicated region
    $region10: #{tpu_custom_call.1} parent=1 // pred_check
      _
    $region11: #{tpu_custom_call.1} parent=1 // pred_check_branch
      %32 = sbr.rel (0) target = $region13
    $region12: #{tpu_custom_call.1} parent=1 // pred_region
      %34 = vsyncadd [#allocation4], 0
      %s36 = sshll.u32 [#allocation5], 4
      %s37 = int_to_ptr.vmem [resolvable:$true] %s36
      %s38 = sshll.u32 %s1, 4
      %s39 = int_to_ptr.hbm [resolvable:$true] %s38
      %41 = dma.vmem_to_hbm [thread:$0]  %s37, 256, %s39, [#allocation4]
    $region13: #{tpu_custom_call.1} parent=1 // pred_fallthru
      _
    // Predicated region
    $region14: #{tpu_custom_call.1} parent=1 // pred_check
      _
    $region15: #{tpu_custom_call.1} parent=1 // pred_check_branch
      %43 = sbr.rel (0) target = $region17
    $region16: #{tpu_custom_call.1} parent=1 // pred_region
      %45 = dma.done [#allocation4], 256
    $region17: #{tpu_custom_call.1} parent=1 // pred_fallthru
      _
    %46 = vsyncpa [#allocation3], 1
    %47 = vsyncpa [#allocation4], 1

</llo_original>
